<compile_context>
chip_gen: v5e
topology: v5e:2x2
jax: 0.10.0
libtpu: 0.0.40
codegen_flags: <defaults>
</compile_context>

<pallas_src>
import jax
import jax.numpy as jnp
from jax import lax
from jax.experimental import pallas as pl
from jax.experimental.pallas import tpu as pltpu


def _round_up(x: int, m: int) -> int:
    return (x + m - 1) // m * m


def _dice_partials_kernel(logits_ref, labels_ref, inter_ref, count_ref, tsum_ref):
    """Grid = (N, num_tiles). Blocks: logits (C, T), labels (1, T).
    Outputs are per-batch (1, T) lane-wide partial sums, accumulated across
    the pixel-tile axis (axis 1, 'arbitrary')."""
    i = pl.program_id(1)

    @pl.when(i == 0)
    def _():
        inter_ref[...] = jnp.zeros_like(inter_ref)
        count_ref[...] = jnp.zeros_like(count_ref)
        tsum_ref[...] = jnp.zeros_like(tsum_ref)

    x = logits_ref[...].astype(jnp.float32)            # (C, T)
    labels = labels_ref[...]                            # (1, T) int32

    # Numerically-stable softmax pieces over the channel (sublane) axis.
    m = jnp.max(x, axis=0, keepdims=True)                # (1, T)
    e = jnp.exp(x - m)                                    # (C, T)
    s = jnp.sum(e, axis=0, keepdims=True)                 # (1, T)

    # One-hot target built in-register: onehot[c, j] = (labels[j] == c).
    # Labels outside [0, C) (incl. the -1 padding sentinel) give all-zero
    # columns and therefore contribute nothing to inter/tsum.
    c_iota = lax.broadcasted_iota(jnp.int32, x.shape, 0)
    onehot = (c_iota == labels).astype(jnp.float32)       # (C, T)

    # intersection per lane: softmax[label, j] = e[label, j] / s[j]
    inter_ref[...] += jnp.sum(e * onehot, axis=0, keepdims=True) * pl.reciprocal(
        s, approx=False
    )
    # sum over the full softmax equals the number of (non-padded) pixels,
    # since each softmax column sums to exactly 1.
    count_ref[...] += (labels >= 0).astype(jnp.float32)
    # one-hot sum (number of pixels whose label hits a real channel)
    tsum_ref[...] += jnp.sum(onehot, axis=0, keepdims=True)


def dice_loss(output, target, smooth=1.0, ignore_index=255, max_tile=8192):
    """Matches DiceLoss.forward.
    output: (N, C, H, W) float logits (f32 or bf16 — upcast happens in-kernel),
    target: (N, H, W) integer labels."""
    N, C, H, W = output.shape
    HW = H * W
    smooth = float(smooth)

    # --- glue: ignore_index handling (PyTorch semantics) ---
    target = target.astype(jnp.int32)
    tmin = jnp.min(target)
    tmax = jnp.max(target)
    # python `ignore_index not in range(min, max)` == not (min <= ii < max)
    not_in_range = jnp.logical_not(
        jnp.logical_and(ignore_index >= tmin, ignore_index < tmax)
    )
    has_ignore = jnp.sum(target == ignore_index) > 0
    do_replace = jnp.logical_and(not_in_range, has_ignore)
    target = jnp.where(
        jnp.logical_and(do_replace, target == ignore_index), tmin, target
    )

    # --- free (contiguous) layout: no HBM transpose ---
    logits = output.reshape(N, C, HW)
    labels = target.reshape(N, 1, HW)

    # --- pick the largest lane tile (multiple of 128, <= max_tile) that
    #     divides the 128-padded pixel extent; pad only if HW % 128 != 0 ---
    HW_pad = _round_up(HW, 128)
    tile = 128
    cand = min(max_tile, HW_pad)
    cand -= cand % 128
    while cand >= 128:
        if HW_pad % cand == 0:
            tile = cand
            break
        cand -= 128

    if HW_pad != HW:
        pad = HW_pad - HW
        logits = jnp.pad(logits, ((0, 0), (0, 0), (0, pad)))
        # -1 sentinel: padded lanes never match a channel and are excluded
        # from the valid-pixel count inside the kernel.
        labels = jnp.pad(labels, ((0, 0), (0, 0), (0, pad)), constant_values=-1)

    num_tiles = HW_pad // tile

    partial_shape = jax.ShapeDtypeStruct((N, 1, tile), jnp.float32)
    partial_spec = pl.BlockSpec((pl.Squeezed(), 1, tile), lambda n, i: (n, 0, 0))

    inter_p, count_p, tsum_p = pl.pallas_call(
        _dice_partials_kernel,
        out_shape=(partial_shape, partial_shape, partial_shape),
        grid_spec=pltpu.PrefetchScalarGridSpec(
            num_scalar_prefetch=0,
            grid=(N, num_tiles),
            in_specs=[
                pl.BlockSpec((pl.Squeezed(), C, tile), lambda n, i: (n, 0, i)),
                pl.BlockSpec((pl.Squeezed(), 1, tile), lambda n, i: (n, 0, i)),
            ],
            out_specs=(partial_spec, partial_spec, partial_spec),
        ),
        compiler_params=pltpu.CompilerParams(
            # batch axis can be split across TensorCores (v7x megacore);
            # the pixel-tile reduction axis stays sequential.
            dimension_semantics=("parallel", "arbitrary"),
        ),
    )(logits, labels)

    # Tiny epilogue reductions (cross-lane + cross-batch) in plain JAX.
    intersection = jnp.sum(inter_p)
    output_sum = jnp.sum(count_p)   # == sum(softmax) analytically
    target_sum = jnp.sum(tsum_p)

    return 1.0 - (2.0 * intersection + smooth) / (output_sum + target_sum + smooth)


if __name__ == "__main__":
    key = jax.random.PRNGKey(0)
    k1, k2 = jax.random.split(key)

    N, C, H, W = 2, 4, 16, 16
    logits = jax.random.normal(k1, (N, C, H, W), dtype=jnp.float32)
    labels = jax.random.randint(k2, (N, H, W), 0, C, dtype=jnp.int32)

    loss = dice_loss(logits, labels, smooth=1.0, ignore_index=255)
    jax.block_until_ready(loss)
    print("KERNEL_OK")
</pallas_src>

<mosaic_0001>
module attributes {stable_mosaic.version = 11 : i64} {
  func.func @_dice_partials_kernel(%arg0: i32, %arg1: i32, %arg2: memref<1x4x256xf32, #tpu.memory_space<vmem>>, %arg3: memref<1x1x256xi32, #tpu.memory_space<vmem>>, %arg4: memref<1x1x256xf32, #tpu.memory_space<vmem>>, %arg5: memref<1x1x256xf32, #tpu.memory_space<vmem>>, %arg6: memref<1x1x256xf32, #tpu.memory_space<vmem>>) attributes {dimension_semantics = [#tpu.dimension_semantics<parallel>, #tpu.dimension_semantics<arbitrary>], iteration_bounds = array<i64: 2, 1>, scalar_prefetch = 0 : i64, scratch_operands = 0 : i64, tpu.core_type = #tpu.core_type<tc>, window_params = [{transform_indices = @transform_0, window_bounds = array<i64: 1, 4, 256>}, {transform_indices = @transform_1, window_bounds = array<i64: 1, 1, 256>}, {transform_indices = @transform_2, window_bounds = array<i64: 1, 1, 256>}, {transform_indices = @transform_3, window_bounds = array<i64: 1, 1, 256>}, {transform_indices = @transform_4, window_bounds = array<i64: 1, 1, 256>}]} {
    %c0_i32 = arith.constant 0 : i32
    %0 = arith.cmpi eq, %arg1, %c0_i32 : i32
    %1 = arith.extui %0 : i1 to i32
    %c0_i32_0 = arith.constant 0 : i32
    %2 = arith.cmpi ne, %1, %c0_i32_0 : i32
    scf.if %2 {
      %cst_28 = arith.constant 0.000000e+00 : f32
      %48 = vector.broadcast %cst_28 : f32 to vector<1x256xf32>
      %c0_29 = arith.constant 0 : index
      %c0_30 = arith.constant 0 : index
      %c0_31 = arith.constant 0 : index
      %49 = vector.load %arg4[%c0_29, %c0_30, %c0_31] : memref<1x1x256xf32, #tpu.memory_space<vmem>>, vector<1x1x256xf32>
      %50 = vector.shape_cast %49 : vector<1x1x256xf32> to vector<1x256xf32>
      %51 = vector.shape_cast %48 : vector<1x256xf32> to vector<1x1x256xf32>
      tpu.vector_store %arg4[%c0_29, %c0_30, %c0_31], %51 {strides = array<i32>} : memref<1x1x256xf32, #tpu.memory_space<vmem>>, vector<1x1x256xf32>,
      %cst_32 = arith.constant 0.000000e+00 : f32
      %52 = vector.broadcast %cst_32 : f32 to vector<1x256xf32>
      %c0_33 = arith.constant 0 : index
      %c0_34 = arith.constant 0 : index
      %c0_35 = arith.constant 0 : index
      %53 = vector.load %arg5[%c0_33, %c0_34, %c0_35] : memref<1x1x256xf32, #tpu.memory_space<vmem>>, vector<1x1x256xf32>
      %54 = vector.shape_cast %53 : vector<1x1x256xf32> to vector<1x256xf32>
      %55 = vector.shape_cast %52 : vector<1x256xf32> to vector<1x1x256xf32>
      tpu.vector_store %arg5[%c0_33, %c0_34, %c0_35], %55 {strides = array<i32>} : memref<1x1x256xf32, #tpu.memory_space<vmem>>, vector<1x1x256xf32>,
      %cst_36 = arith.constant 0.000000e+00 : f32
      %56 = vector.broadcast %cst_36 : f32 to vector<1x256xf32>
      %c0_37 = arith.constant 0 : index
      %c0_38 = arith.constant 0 : index
      %c0_39 = arith.constant 0 : index
      %57 = vector.load %arg6[%c0_37, %c0_38, %c0_39] : memref<1x1x256xf32, #tpu.memory_space<vmem>>, vector<1x1x256xf32>
      %58 = vector.shape_cast %57 : vector<1x1x256xf32> to vector<1x256xf32>
      %59 = vector.shape_cast %56 : vector<1x256xf32> to vector<1x1x256xf32>
      tpu.vector_store %arg6[%c0_37, %c0_38, %c0_39], %59 {strides = array<i32>} : memref<1x1x256xf32, #tpu.memory_space<vmem>>, vector<1x1x256xf32>,
    } else {
    }
    %c0 = arith.constant 0 : index
    %c0_1 = arith.constant 0 : index
    %c0_2 = arith.constant 0 : index
    %3 = vector.load %arg2[%c0, %c0_1, %c0_2] : memref<1x4x256xf32, #tpu.memory_space<vmem>>, vector<1x4x256xf32>
    %4 = vector.shape_cast %3 : vector<1x4x256xf32> to vector<4x256xf32>
    %c0_3 = arith.constant 0 : index
    %c0_4 = arith.constant 0 : index
    %c0_5 = arith.constant 0 : index
    %5 = vector.load %arg3[%c0_3, %c0_4, %c0_5] : memref<1x1x256xi32, #tpu.memory_space<vmem>>, vector<1x1x256xi32>
    %6 = vector.shape_cast %5 : vector<1x1x256xi32> to vector<1x256xi32>
    %cst = arith.constant dense<0xFF800000> : vector<256xf32>
    %7 = vector.multi_reduction <maximumf>, %4, %cst [0] : vector<4x256xf32> to vector<256xf32>
    %8 = vector.shape_cast %7 : vector<256xf32> to vector<1x256xf32>
    %9 = vector.broadcast %8 : vector<1x256xf32> to vector<4x256xf32>
    %10 = arith.subf %4, %9 : vector<4x256xf32>
    %11 = math.exp %10 : vector<4x256xf32>
    %cst_6 = arith.constant dense<0.000000e+00> : vector<256xf32>
    %12 = vector.multi_reduction <add>, %11, %cst_6 [0] : vector<4x256xf32> to vector<256xf32>
    %13 = vector.shape_cast %12 : vector<256xf32> to vector<1x256xf32>
    %14 = tpu.iota {dimensions = array<i32: 0>} : vector<4x256xi32>
    %15 = vector.broadcast %6 : vector<1x256xi32> to vector<4x256xi32>
    %16 = arith.cmpi eq, %14, %15 : vector<4x256xi32>
    %17 = arith.extui %16 : vector<4x256xi1> to vector<4x256xi32>
    %18 = arith.sitofp %17 : vector<4x256xi32> to vector<4x256xf32>
    %c0_7 = arith.constant 0 : index
    %c0_8 = arith.constant 0 : index
    %c0_9 = arith.constant 0 : index
    %19 = vector.load %arg4[%c0_7, %c0_8, %c0_9] : memref<1x1x256xf32, #tpu.memory_space<vmem>>, vector<1x1x256xf32>
    %20 = vector.shape_cast %19 : vector<1x1x256xf32> to vector<1x256xf32>
    %21 = arith.mulf %11, %18 : vector<4x256xf32>
    %cst_10 = arith.constant dense<0.000000e+00> : vector<256xf32>
    %22 = vector.multi_reduction <add>, %21, %cst_10 [0] : vector<4x256xf32> to vector<256xf32>
    %23 = vector.shape_cast %22 : vector<256xf32> to vector<1x256xf32>
    %24 = tpu.reciprocal %13 : vector<1x256xf32> -> vector<1x256xf32>
    %25 = arith.mulf %23, %24 : vector<1x256xf32>
    %26 = arith.addf %20, %25 : vector<1x256xf32>
    %c0_11 = arith.constant 0 : index
    %c0_12 = arith.constant 0 : index
    %c0_13 = arith.constant 0 : index
    %27 = vector.load %arg4[%c0_11, %c0_12, %c0_13] : memref<1x1x256xf32, #tpu.memory_space<vmem>>, vector<1x1x256xf32>
    %28 = vector.shape_cast %27 : vector<1x1x256xf32> to vector<1x256xf32>
    %29 = vector.shape_cast %26 : vector<1x256xf32> to vector<1x1x256xf32>
    tpu.vector_store %arg4[%c0_11, %c0_12, %c0_13], %29 {strides = array<i32>} : memref<1x1x256xf32, #tpu.memory_space<vmem>>, vector<1x1x256xf32>,
    %c0_14 = arith.constant 0 : index
    %c0_15 = arith.constant 0 : index
    %c0_16 = arith.constant 0 : index
    %30 = vector.load %arg5[%c0_14, %c0_15, %c0_16] : memref<1x1x256xf32, #tpu.memory_space<vmem>>, vector<1x1x256xf32>
    %31 = vector.shape_cast %30 : vector<1x1x256xf32> to vector<1x256xf32>
    %c0_i32_17 = arith.constant 0 : i32
    %32 = vector.broadcast %c0_i32_17 : i32 to vector<1x256xi32>
    %33 = arith.cmpi sge, %6, %32 : vector<1x256xi32>
    %34 = arith.extui %33 : vector<1x256xi1> to vector<1x256xi32>
    %35 = arith.sitofp %34 : vector<1x256xi32> to vector<1x256xf32>
    %36 = arith.addf %31, %35 : vector<1x256xf32>
    %c0_18 = arith.constant 0 : index
    %c0_19 = arith.constant 0 : index
    %c0_20 = arith.constant 0 : index
    %37 = vector.load %arg5[%c0_18, %c0_19, %c0_20] : memref<1x1x256xf32, #tpu.memory_space<vmem>>, vector<1x1x256xf32>
    %38 = vector.shape_cast %37 : vector<1x1x256xf32> to vector<1x256xf32>
    %39 = vector.shape_cast %36 : vector<1x256xf32> to vector<1x1x256xf32>
    tpu.vector_store %arg5[%c0_18, %c0_19, %c0_20], %39 {strides = array<i32>} : memref<1x1x256xf32, #tpu.memory_space<vmem>>, vector<1x1x256xf32>,
    %c0_21 = arith.constant 0 : index
    %c0_22 = arith.constant 0 : index
    %c0_23 = arith.constant 0 : index
    %40 = vector.load %arg6[%c0_21, %c0_22, %c0_23] : memref<1x1x256xf32, #tpu.memory_space<vmem>>, vector<1x1x256xf32>
    %41 = vector.shape_cast %40 : vector<1x1x256xf32> to vector<1x256xf32>
    %cst_24 = arith.constant dense<0.000000e+00> : vector<256xf32>
    %42 = vector.multi_reduction <add>, %18, %cst_24 [0] : vector<4x256xf32> to vector<256xf32>
    %43 = vector.shape_cast %42 : vector<256xf32> to vector<1x256xf32>
    %44 = arith.addf %41, %43 : vector<1x256xf32>
    %c0_25 = arith.constant 0 : index
    %c0_26 = arith.constant 0 : index
    %c0_27 = arith.constant 0 : index
    %45 = vector.load %arg6[%c0_25, %c0_26, %c0_27] : memref<1x1x256xf32, #tpu.memory_space<vmem>>, vector<1x1x256xf32>
    %46 = vector.shape_cast %45 : vector<1x1x256xf32> to vector<1x256xf32>
    %47 = vector.shape_cast %44 : vector<1x256xf32> to vector<1x1x256xf32>
    tpu.vector_store %arg6[%c0_25, %c0_26, %c0_27], %47 {strides = array<i32>} : memref<1x1x256xf32, #tpu.memory_space<vmem>>, vector<1x1x256xf32>,
    return
  }
  func.func @transform_0(%arg0: i32, %arg1: i32) -> (i32, i32, i32) {
    %c0_i32 = arith.constant 0 : i32
    %c0_i32_0 = arith.constant 0 : i32
    return %arg0, %c0_i32, %arg1 : i32, i32, i32
  }
  func.func @transform_1(%arg0: i32, %arg1: i32) -> (i32, i32, i32) {
    %c0_i32 = arith.constant 0 : i32
    %c0_i32_0 = arith.constant 0 : i32
    return %arg0, %c0_i32, %arg1 : i32, i32, i32
  }
  func.func @transform_2(%arg0: i32, %arg1: i32) -> (i32, i32, i32) {
    %c0_i32 = arith.constant 0 : i32
    %c0_i32_0 = arith.constant 0 : i32
    %c0_i32_1 = arith.constant 0 : i32
    return %arg0, %c0_i32, %c0_i32_0 : i32, i32, i32
  }
  func.func @transform_3(%arg0: i32, %arg1: i32) -> (i32, i32, i32) {
    %c0_i32 = arith.constant 0 : i32
    %c0_i32_0 = arith.constant 0 : i32
    %c0_i32_1 = arith.constant 0 : i32
    return %arg0, %c0_i32, %c0_i32_0 : i32, i32, i32
  }
  func.func @transform_4(%arg0: i32, %arg1: i32) -> (i32, i32, i32) {
    %c0_i32 = arith.constant 0 : i32
    %c0_i32_0 = arith.constant 0 : i32
    %c0_i32_1 = arith.constant 0 : i32
    return %arg0, %c0_i32, %c0_i32_0 : i32, i32, i32
  }
}

</mosaic_0001>

<llo_original>
// kernel: tpu_custom_call.1
$region0: #{tpu_custom_call.1}
  #allocation0 [shape = 'u32[]', space=smem, size = 0x4, offset = 0x4, fixed_abs, tag = 'smem constant byte address 0x4 - core index']
  #allocation1 [shape = 'u32[72,128]{1,0:T(1,128)}', space=vmem, size = 0x9000, scoped, tag = 'internal scratch']
  %s0 = inlined_call_operand.hbm [shape: f32[2,4,256], index: 0, kind: input, shape index: {}]
  %s1 = inlined_call_operand.hbm [shape: s32[2,1,256], index: 1, kind: input, shape index: {}]
  %s2 = inlined_call_operand.hbm [shape: f32[2,1,256], index: 2, kind: output, shape index: {0}]
  %s3 = inlined_call_operand.hbm [shape: f32[2,1,256], index: 3, kind: output, shape index: {1}]
  %s4 = inlined_call_operand.hbm [shape: f32[2,1,256], index: 4, kind: output, shape index: {2}]
  %5 = xla_tuple %s2, %s3, %s4
  %s6 = sld [smem:[#allocation0]]
  $region69: #{tpu_custom_call.1} parent=0
    _
  %s8 = ssub.s32 1, %s6
  %s9 = scalar_select 0, %s8, %s6
  $region1: #{tpu_custom_call.1} parent=0
    #allocation2 [shape = 'u8[8192]{0}', space=vmem, size = 0x2000, scoped, tag = 'input window, operand 0']
    #allocation3 [shape = 's32[2]{0}', space=sflag, size = 0x8, scoped, tag = 'scoped memory for tpu_custom_call.1']
    #allocation4 [shape = 's32[2]{0}', space=sflag, size = 0x8, scoped, tag = 'scoped memory for tpu_custom_call.1']
    #allocation5 [shape = 'u8[2048]{0}', space=vmem, size = 0x800, scoped, tag = 'input window, operand 1']
    #allocation6 [shape = 's32[2]{0}', space=sflag, size = 0x8, scoped, tag = 'scoped memory for tpu_custom_call.1']
    #allocation7 [shape = 'u8[2048]{0}', space=vmem, size = 0x800, scoped, tag = 'output window, operand 0']
    #allocation8 [shape = 'u8[2048]{0}', space=vmem, size = 0x800, scoped, tag = 'output window, operand 1']
    #allocation9 [shape = 's32[2]{0}', space=sflag, size = 0x8, scoped, tag = 'scoped memory for tpu_custom_call.1']
    #allocation10 [shape = 'u8[2048]{0}', space=vmem, size = 0x800, scoped, tag = 'output window, operand 2']
    %10 = vsyncpa [#allocation3], 0
    %s11 = scalar_lea.sflag [#allocation3], 1
    %12 = vsyncpa %s11, 0
    %13 = vsyncpa [#allocation6], 0
    %s14 = scalar_lea.sflag [#allocation6], 1
    %15 = vsyncpa %s14, 0
    %16 = vsyncpa [#allocation4], 0
    %s17 = scalar_lea.sflag [#allocation4], 1
    %18 = vsyncpa %s17, 0
    %19 = vsyncpa [#allocation9], 0
    %s20 = scalar_lea.sflag [#allocation9], 1
    %21 = vsyncpa %s20, 0
    loop: start=0, step=1, limit=4
    $region2: #{tpu_custom_call.1} parent=1 // loop_pre_header
      _
    $region3: #{tpu_custom_call.1} parent=1 // loop_header
      %s23 = sphi 0, %s27
      %p24 = scmp.ge.s32.totalorder %s23, 4
      %s30 = sphi 0, %s42
      %s31 = sphi 0, %s38
      %s32 = sphi 0, %s30
      %s33 = sphi 0, %s31
      %s34 = sphi 0, %s32
      %s35 = sphi 0, %s33
      %s47 = sphi 0, %s49
      %s50 = sphi 0, %s47
      %s51 = sphi 0, %s50
      %s67 = sphi 0, %s51
      %s75 = sphi 0, %s77
      %s78 = sphi 0, %s75
      %s79 = sphi 0, %s78
      %s95 = sphi 0, %s79
      %s101 = sphi 0, %s103
      %s104 = sphi 0, %s101
      %s105 = sphi 0, %s104
      %s121 = sphi 0, %s105
      %s127 = sphi 0, %s129
      %s130 = sphi 0, %s127
      %s131 = sphi 0, %s130
      %s147 = sphi 0, %s131
      %s153 = sphi 0, %s155
      %s156 = sphi 0, %s153
      %s157 = sphi 0, %s156
      %s173 = sphi 0, %s157
    $region4: #{tpu_custom_call.1} parent=1 // loop_header_branch
      %26 = sbr.rel (%p24) target = $region8
    $region5: #{tpu_custom_call.1} parent=1 // loop_body
      %s28 = ssub.s32 %s23, 1
      %s29 = ssub.s32 %s23, 2
      %s36 = sadd.s32 1, %s31
      %p37 = scmp.ge.s32.totalorder %s36, 1
      %s38 = scalar_select %p37, 0, %s36
      %s39 = sadd.s32 1, %s30
      %s40 = scalar_select %p37, %s39, %s30
      %p41 = scmp.ge.s32.totalorder %s40, 2
      %s42 = scalar_select %p41, 0, %s40
      %s43 = ssub.s32 %s30, %s42
      %s44 = ssub.s32 %s31, %s38
      %s45 = sor.u32 %s43, %s44
      %p46 = scmp.eq.s32.totalorder %s45, 0
      %s48 = sadd.s32 %s47, 1
      %s49 = scalar_select %p46, %s47, %s48
      %p52 = pneg %p46
      %p53 = scmp.eq.s32.totalorder %s23, 1
      %p54 = por %p52, %p53
      %p55 = scmp.ne.s32.totalorder %s47, %s50
      %p56 = scmp.eq.s32.totalorder %s23, 0
      %p57 = por %p55, %p56
      %p58 = scmp.ne.s32.totalorder %s47, %s50
      %p59 = scmp.eq.s32.totalorder %s28, 1
      %p60 = por %p58, %p59
      %p61 = scmp.ne.s32.totalorder %s50, %s51
      %p62 = scmp.eq.s32.totalorder %s28, 0
      %p63 = por %p61, %p62
      %p64 = scmp.ne.s32.totalorder %s50, %s51
      %p65 = scmp.eq.s32.totalorder %s29, 1
      %p66 = por %p64, %p65
      %p68 = scmp.ne.s32.totalorder %s51, %s67
      %p69 = scmp.eq.s32.totalorder %s29, 0
      %p70 = por %p68, %p69
      %s71 = ssub.s32 %s30, %s42
      %s72 = ssub.s32 %s31, %s38
      %s73 = sor.u32 %s71, %s72
      %p74 = scmp.eq.s32.totalorder %s73, 0
      %s76 = sadd.s32 %s75, 1
      %s77 = scalar_select %p74, %s75, %s76
      %p80 = pneg %p74
      %p81 = scmp.eq.s32.totalorder %s23, 1
      %p82 = por %p80, %p81
      %p83 = scmp.ne.s32.totalorder %s75, %s78
      %p84 = scmp.eq.s32.totalorder %s23, 0
      %p85 = por %p83, %p84
      %p86 = scmp.ne.s32.totalorder %s75, %s78
      %p87 = scmp.eq.s32.totalorder %s28, 1
      %p88 = por %p86, %p87
      %p89 = scmp.ne.s32.totalorder %s78, %s79
      %p90 = scmp.eq.s32.totalorder %s28, 0
      %p91 = por %p89, %p90
      %p92 = scmp.ne.s32.totalorder %s78, %s79
      %p93 = scmp.eq.s32.totalorder %s29, 1
      %p94 = por %p92, %p93
      %p96 = scmp.ne.s32.totalorder %s79, %s95
      %p97 = scmp.eq.s32.totalorder %s29, 0
      %p98 = por %p96, %p97
      %s99 = ssub.s32 %s30, %s42
      %p100 = scmp.eq.s32.totalorder %s99, 0
      %s102 = sadd.s32 %s101, 1
      %s103 = scalar_select %p100, %s101, %s102
      %p106 = pneg %p100
      %p107 = scmp.eq.s32.totalorder %s23, 1
      %p108 = por %p106, %p107
      %p109 = scmp.ne.s32.totalorder %s101, %s104
      %p110 = scmp.eq.s32.totalorder %s23, 0
      %p111 = por %p109, %p110
      %p112 = scmp.ne.s32.totalorder %s101, %s104
      %p113 = scmp.eq.s32.totalorder %s28, 1
      %p114 = por %p112, %p113
      %p115 = scmp.ne.s32.totalorder %s104, %s105
      %p116 = scmp.eq.s32.totalorder %s28, 0
      %p117 = por %p115, %p116
      %p118 = scmp.ne.s32.totalorder %s104, %s105
      %p119 = scmp.eq.s32.totalorder %s29, 1
      %p120 = por %p118, %p119
      %p122 = scmp.ne.s32.totalorder %s105, %s121
      %p123 = scmp.eq.s32.totalorder %s29, 0
      %p124 = por %p122, %p123
      %s125 = ssub.s32 %s30, %s42
      %p126 = scmp.eq.s32.totalorder %s125, 0
      %s128 = sadd.s32 %s127, 1
      %s129 = scalar_select %p126, %s127, %s128
      %p132 = pneg %p126
      %p133 = scmp.eq.s32.totalorder %s23, 1
      %p134 = por %p132, %p133
      %p135 = scmp.ne.s32.totalorder %s127, %s130
      %p136 = scmp.eq.s32.totalorder %s23, 0
      %p137 = por %p135, %p136
      %p138 = scmp.ne.s32.totalorder %s127, %s130
      %p139 = scmp.eq.s32.totalorder %s28, 1
      %p140 = por %p138, %p139
      %p141 = scmp.ne.s32.totalorder %s130, %s131
      %p142 = scmp.eq.s32.totalorder %s28, 0
      %p143 = por %p141, %p142
      %p144 = scmp.ne.s32.totalorder %s130, %s131
      %p145 = scmp.eq.s32.totalorder %s29, 1
      %p146 = por %p144, %p145
      %p148 = scmp.ne.s32.totalorder %s131, %s147
      %p149 = scmp.eq.s32.totalorder %s29, 0
      %p150 = por %p148, %p149
      %s151 = ssub.s32 %s30, %s42
      %p152 = scmp.eq.s32.totalorder %s151, 0
      %s154 = sadd.s32 %s153, 1
      %s155 = scalar_select %p152, %s153, %s154
      %p158 = pneg %p152
      %p159 = scmp.eq.s32.totalorder %s23, 1
      %p160 = por %p158, %p159
      %p161 = scmp.ne.s32.totalorder %s153, %s156
      %p162 = scmp.eq.s32.totalorder %s23, 0
      %p163 = por %p161, %p162
      %p164 = scmp.ne.s32.totalorder %s153, %s156
      %p165 = scmp.eq.s32.totalorder %s28, 1
      %p166 = por %p164, %p165
      %p167 = scmp.ne.s32.totalorder %s156, %s157
      %p168 = scmp.eq.s32.totalorder %s28, 0
      %p169 = por %p167, %p168
      %p170 = scmp.ne.s32.totalorder %s156, %s157
      %p171 = scmp.eq.s32.totalorder %s29, 1
      %p172 = por %p170, %p171
      %p174 = scmp.ne.s32.totalorder %s157, %s173
      %p175 = scmp.eq.s32.totalorder %s29, 0
      %p176 = por %p174, %p175
      %p177 = scmp.le.s32.totalorder 1, %s23
      %p178 = scmp.lt.s32.totalorder %s23, 3
      %p179 = pnand %p177, %p178
      %p180 = pneg %p179
      // Predicated region
      $region9: #{tpu_custom_call.1} parent=5 // pred_check
        _
      $region10: #{tpu_custom_call.1} parent=5 // pred_check_branch
        %182 = sbr.rel (%p179) target = $region12
      $region11: #{tpu_custom_call.1} parent=5 // pred_region
        %s183 = ssub.s32 %s23, 1
      $region12: #{tpu_custom_call.1} parent=5 // pred_fallthru
        _
      %p184 = scmp.lt.s32.totalorder %s23, 2
      // Predicated region
      $region13: #{tpu_custom_call.1} parent=5 // pred_check
        %p185 = pneg %p184
      $region14: #{tpu_custom_call.1} parent=5 // pred_check_branch
        %187 = sbr.rel (%p185) target = $region16
      $region15: #{tpu_custom_call.1} parent=5 // pred_region
        // Predicated region
        $region17: #{tpu_custom_call.1} parent=15 // pred_check
          %p188 = pneg %p57
        $region18: #{tpu_custom_call.1} parent=15 // pred_check_branch
          %190 = sbr.rel (%p188) target = $region20
        $region19: #{tpu_custom_call.1} parent=15 // pred_region
          %s191 = sand.u32 %s47, 1
          %s192 = scalar_lea.sflag [#allocation3], %s191
          %s193 = sand.u32 %s47, 1
          %s194 = smul.addr %s193, 8
          %s195 = scalar_lea.vmem [#allocation2], %s194
          %s196 = smul.u32 2, %s31
          %198 = vsyncadd %s192, 0
          %s199 = smul.addr %s30, 2
          %s200 = sadd.s32 %s196, %s199
          %s201 = smul.addr %s200, 4
          %s202 = scalar_lea.hbm %s0, %s201
          %s204 = sshll.u32 %s202, 4
          %s205 = int_to_ptr.hbm [resolvable:$true] %s204
          %s206 = sshll.u32 %s195, 4
          %s207 = int_to_ptr.vmem [resolvable:$true] %s206
          %209 = dma.hbm_to_vmem [thread:$0]  %s205, 128, %s207, %s192
        $region20: #{tpu_custom_call.1} parent=15 // pred_fallthru
          _
        // Predicated region
        $region21: #{tpu_custom_call.1} parent=15 // pred_check
          %p210 = pneg %p85
        $region22: #{tpu_custom_call.1} parent=15 // pred_check_branch
          %212 = sbr.rel (%p210) target = $region24
        $region23: #{tpu_custom_call.1} parent=15 // pred_region
          %s213 = sand.u32 %s75, 1
          %s214 = scalar_lea.sflag [#allocation6], %s213
          %s215 = sand.u32 %s75, 1
          %s216 = smul.addr %s215, 2
          %s217 = scalar_lea.vmem [#allocation5], %s216
          %s218 = smul.u32 2, %s31
          %220 = vsyncadd %s214, 0
          %s221 = smul.addr %s30, 2
          %s222 = sadd.s32 %s218, %s221
          %s223 = scalar_lea.hbm %s1, %s222
          %s225 = sshll.u32 %s223, 4
          %s226 = int_to_ptr.hbm [resolvable:$true] %s225
          %s227 = sshll.u32 %s217, 4
          %s228 = int_to_ptr.vmem [resolvable:$true] %s227
          %230 = dma.hbm_to_vmem [thread:$0]  %s226, 32, %s228, %s214
        $region24: #{tpu_custom_call.1} parent=15 // pred_fallthru
          _
      $region16: #{tpu_custom_call.1} parent=5 // pred_fallthru
        _
      %p231 = scmp.le.s32.totalorder 1, %s23
      %p232 = scmp.lt.s32.totalorder %s23, 3
      %p233 = pnand %p231, %p232
      %p234 = pneg %p233
      // Predicated region
      $region25: #{tpu_custom_call.1} parent=5 // pred_check
        _
      $region26: #{tpu_custom_call.1} parent=5 // pred_check_branch
        %236 = sbr.rel (%p233) target = $region28
      $region27: #{tpu_custom_call.1} parent=5 // pred_region
        %s237 = ssub.s32 %s23, 1
        %s238 = sand.u32 %s50, 1
        %s239 = scalar_lea.sflag [#allocation3], %s238
        %s240 = sand.u32 %s50, 1
        %s241 = smul.addr %s240, 8
        %s242 = scalar_lea.vmem [#allocation2], %s241
        // Predicated region
        $region29: #{tpu_custom_call.1} parent=27 // pred_check
          %p243 = pneg %p63
        $region30: #{tpu_custom_call.1} parent=27 // pred_check_branch
          %245 = sbr.rel (%p243) target = $region32
        $region31: #{tpu_custom_call.1} parent=27 // pred_region
          %247 = dma.done %s239, 128
        $region32: #{tpu_custom_call.1} parent=27 // pred_fallthru
          _
        %s248 = sand.u32 %s78, 1
        %s249 = scalar_lea.sflag [#allocation6], %s248
        %s250 = sand.u32 %s78, 1
        %s251 = smul.addr %s250, 2
        %s252 = scalar_lea.vmem [#allocation5], %s251
        // Predicated region
        $region33: #{tpu_custom_call.1} parent=27 // pred_check
          %p253 = pneg %p91
        $region34: #{tpu_custom_call.1} parent=27 // pred_check_branch
          %255 = sbr.rel (%p253) target = $region36
        $region35: #{tpu_custom_call.1} parent=27 // pred_region
          %257 = dma.done %s249, 32
        $region36: #{tpu_custom_call.1} parent=27 // pred_fallthru
          _
        %s258 = sand.u32 %s50, 1
        %s259 = scalar_lea.sflag [#allocation3], %s258
        %s260 = sand.u32 %s50, 1
        %s261 = smul.addr %s260, 8
        %s262 = scalar_lea.vmem [#allocation2], %s261
        %p263 = pneg %p63
        %p264 = pneg %p60
        %s265 = sand.u32 %s78, 1
        %s266 = scalar_lea.sflag [#allocation6], %s265
        %s267 = sand.u32 %s78, 1
        %s268 = smul.addr %s267, 2
        %s269 = scalar_lea.vmem [#allocation5], %s268
        %p270 = pneg %p91
        %p271 = pneg %p88
        %p272 = pneg %p117
        %p273 = pneg %p114
        %s274 = sand.u32 %s104, 1
        %s275 = scalar_lea.sflag [#allocation4], %s274
        %s276 = sand.u32 %s104, 1
        %s277 = smul.addr %s276, 2
        %s278 = scalar_lea.vmem [#allocation7], %s277
        %p279 = pneg %p143
        %p280 = pneg %p140
        %s281 = sand.u32 %s28, 1
        %s282 = scalar_lea.sflag [#allocation9], %s281
        %s283 = sand.u32 %s130, 1
        %s284 = smul.addr %s283, 2
        %s285 = scalar_lea.vmem [#allocation8], %s284
        %p286 = pneg %p169
        %p287 = pneg %p166
        %s288 = sand.u32 %s28, 1
        %s289 = scalar_lea.sflag [#allocation9], %s288
        %s290 = sand.u32 %s156, 1
        %s291 = smul.addr %s290, 2
        %s292 = scalar_lea.vmem [#allocation10], %s291
        %s293 = smul.u32 2, %s33
        %s294 = smul.u32 2, %s33
        %p295 = scmp.eq.s32.totalorder %s33, 0
        // Predicated region
        $region37: #{tpu_custom_call.1} parent=27 // pred_check
          %p296 = pneg %p295
        $region38: #{tpu_custom_call.1} parent=27 // pred_check_branch
          %298 = sbr.rel (%p296) target = $region40
        $region39: #{tpu_custom_call.1} parent=27 // pred_region
          %v299 = vlaneseq
          %vm300 = vcmp.ge.s32.totalorder %v299, 0
          %vm301 = vcmp.lt.s32.totalorder %v299, 256
          %vm302 = vmand %vm300, %vm301
          %303 = vst.msk [vmem:[%s278] sm:$0x3] %vm302, 0.0
          %304 = vst.msk [vmem:[%s285] sm:$0x3] %vm302, 0.0
          %305 = vst.msk [vmem:[%s292] sm:$0x3] %vm302, 0.0
        $region40: #{tpu_custom_call.1} parent=27 // pred_fallthru
          _
        %v306 = vld [vmem:[%s242] sm:$0xff]
        %v307 = vld [vmem:[%s252] sm:$0x3]
        %309 = vst [vmem:[#allocation1] ss:$2 sm:$0xff] %v306
        %v310 = vld.sshfl [vmem:[#allocation1] sm:$0xff pattern:$0x75316420]
        %v311 = vld.sshfl [vmem:[#allocation1 + $0x8] sm:$0xff pattern:$0x75316420]
        %vm314 = vcmask 1043456
        %v315 = vsel %vm314, %v310, -inf
        %v316 = vrot.slane %v315, 4
        %v317 = vmax.f32 %v315, %v316
        %v318 = vrot.slane %v317, 2
        %v319 = vmax.f32 %v317, %v318
        %v320 = vrot.slane %v319, 1
        %v321 = vmax.f32 %v319, %v320
        %v322 = vsel %vm314, %v311, -inf
        %v323 = vrot.slane %v322, 4
        %v324 = vmax.f32 %v322, %v323
        %v325 = vrot.slane %v324, 2
        %v326 = vmax.f32 %v324, %v325
        %v327 = vrot.slane %v326, 1
        %v328 = vmax.f32 %v326, %v327
        %v331 = vrot.slane %v328, 4
        %v332 = vsel %vm314, %v321, %v331
        %v334 = vsub.f32 %v306, %v332
        %v335 = vmul.f32 %v334, 1.442695
        %v336 = vpow.pop %v335
        %338 = vst [vmem:[#allocation1] ss:$2 sm:$0xff] %v336
        %v339 = vld.sshfl [vmem:[#allocation1] sm:$0xff pattern:$0x75316420]
        %v340 = vld.sshfl [vmem:[#allocation1 + $0x8] sm:$0xff pattern:$0x75316420]
        %v343 = vsel %vm314, %v339, 0.0
        %v344 = vrot.slane %v343, 4
        %v345 = vadd.f32 %v343, %v344
        %v346 = vrot.slane %v345, 2
        %v347 = vadd.f32 %v345, %v346
        %v348 = vrot.slane %v347, 1
        %v349 = vadd.f32 %v347, %v348
        %v350 = vsel %vm314, %v340, 0.0
        %v351 = vrot.slane %v350, 4
        %v352 = vadd.f32 %v350, %v351
        %v353 = vrot.slane %v352, 2
        %v354 = vadd.f32 %v352, %v353
        %v355 = vrot.slane %v354, 1
        %v356 = vadd.f32 %v354, %v355
        %v357 = vlaneseq
        %v358 = vshrl.u32 %v357, 7
        %v359 = vperm.slane %v307, 0
        %v360 = vperm.slane %v307, 1
        %vm361 = vcmp.eq.s32.totalorder %v358, %v359
        %vm362 = vcmp.eq.s32.totalorder %v358, %v360
        %v363 = vsel %vm361, 1, 0
        %v364 = vsel %vm362, 1, 0
        %v365 = vcvt.s32.f32 %v363
        %v366 = vcvt.s32.f32 %v364
        %v367 = vld [vmem:[%s278] sm:$0x3]
        %v370 = vrot.slane %v366, 4
        %v371 = vsel %vm314, %v365, %v370
        %v373 = vmul.f32 %v336, %v371
        %375 = vst [vmem:[#allocation1] ss:$2 sm:$0xff] %v373
        %v376 = vld.sshfl [vmem:[#allocation1] sm:$0xff pattern:$0x75316420]
        %v377 = vld.sshfl [vmem:[#allocation1 + $0x8] sm:$0xff pattern:$0x75316420]
        %v380 = vsel %vm314, %v376, 0.0
        %v381 = vrot.slane %v380, 4
        %v382 = vadd.f32 %v380, %v381
        %v383 = vrot.slane %v382, 2
        %v384 = vadd.f32 %v382, %v383
        %v385 = vrot.slane %v384, 1
        %v386 = vadd.f32 %v384, %v385
        %v387 = vsel %vm314, %v377, 0.0
        %v388 = vrot.slane %v387, 4
        %v389 = vadd.f32 %v387, %v388
        %v390 = vrot.slane %v389, 2
        %v391 = vadd.f32 %v389, %v390
        %v392 = vrot.slane %v391, 1
        %v393 = vadd.f32 %v391, %v392
        %v394 = vrcp.pop %v349
        %v395 = vmul.f32 %v349, %v394
        %v396 = vsub.f32 1.0, %v395
        %v397 = vmul.f32 %v394, %v396
        %v398 = vadd.f32 %v394, %v397
        %vm399 = vweird.f32 %v349
        %vm400 = vweird.f32 %v394
        %vm401 = vmor %vm399, %vm400
        %v402 = vsel %vm401, %v394, %v398
        %v403 = vand.u32 2147483647, %v349
        %vm404 = vcmp.eq.f32.partialorder %v403, 8.507059e+37
        %v405 = vand.u32 %v349, 2147483648
        %v406 = vor.u32 1.1754944e-38, %v405
        %v407 = vsel %vm404, %v406, %v402
        %v408 = vrcp.pop %v356
        %v409 = vmul.f32 %v356, %v408
        %v410 = vsub.f32 1.0, %v409
        %v411 = vmul.f32 %v408, %v410
        %v412 = vadd.f32 %v408, %v411
        %vm413 = vweird.f32 %v356
        %vm414 = vweird.f32 %v408
        %vm415 = vmor %vm413, %vm414
        %v416 = vsel %vm415, %v408, %v412
        %v417 = vand.u32 2147483647, %v356
        %vm418 = vcmp.eq.f32.partialorder %v417, 8.507059e+37
        %v419 = vand.u32 %v356, 2147483648
        %v420 = vor.u32 1.1754944e-38, %v419
        %v421 = vsel %vm418, %v420, %v416
        %v422 = vmul.f32 %v386, %v407
        %v423 = vmul.f32 %v393, %v421
        %v426 = vrot.slane %v423, 7
        %vm427 = vcmask 1040384
        %v428 = vsel %vm427, %v422, %v426
        %v430 = vadd.f32 %v367, %v428
        %v431 = vlaneseq
        %vm432 = vcmp.ge.s32.totalorder %v431, 0
        %vm433 = vcmp.lt.s32.totalorder %v431, 256
        %vm434 = vmand %vm432, %vm433
        %435 = vst.msk [vmem:[%s278] sm:$0x3] %vm434, %v430
        %v436 = vld [vmem:[%s285] sm:$0x3]
        %vm437 = vcmp.ge.s32.totalorder %v307, 0
        %v438 = vsel %vm437, 1, 0
        %v439 = vcvt.s32.f32 %v438
        %v440 = vadd.f32 %v436, %v439
        %441 = vst.msk [vmem:[%s285] sm:$0x3] %vm434, %v440
        %v442 = vld [vmem:[%s292] sm:$0x3]
        %v443 = vsel %vm314, %v365, 0.0
        %v444 = vrot.slane %v443, 4
        %v445 = vadd.f32 %v443, %v444
        %v446 = vrot.slane %v445, 2
        %v447 = vadd.f32 %v445, %v446
        %v448 = vrot.slane %v447, 1
        %v449 = vadd.f32 %v447, %v448
        %v450 = vsel %vm314, %v366, 0.0
        %v451 = vrot.slane %v450, 4
        %v452 = vadd.f32 %v450, %v451
        %v453 = vrot.slane %v452, 2
        %v454 = vadd.f32 %v452, %v453
        %v455 = vrot.slane %v454, 1
        %v456 = vadd.f32 %v454, %v455
        %v459 = vrot.slane %v456, 7
        %v460 = vsel %vm427, %v449, %v459
        %v462 = vadd.f32 %v442, %v460
        %463 = vst.msk [vmem:[%s292] sm:$0x3] %vm434, %v462
        %s464 = sand.u32 %s104, 1
        %s465 = scalar_lea.sflag [#allocation4], %s464
        %s466 = sand.u32 %s104, 1
        %s467 = smul.addr %s466, 2
        %s468 = scalar_lea.vmem [#allocation7], %s467
        %s469 = sand.u32 %s28, 1
        %s470 = scalar_lea.sflag [#allocation9], %s469
        %s471 = sand.u32 %s130, 1
        %s472 = smul.addr %s471, 2
        %s473 = scalar_lea.vmem [#allocation8], %s472
        %s474 = sand.u32 %s28, 1
        %s475 = scalar_lea.sflag [#allocation9], %s474
        %s476 = sand.u32 %s156, 1
        %s477 = smul.addr %s476, 2
        %s478 = scalar_lea.vmem [#allocation10], %s477
        // Predicated region
        $region41: #{tpu_custom_call.1} parent=27 // pred_check
          %p479 = pneg %p114
        $region42: #{tpu_custom_call.1} parent=27 // pred_check_branch
          %481 = sbr.rel (%p479) target = $region44
        $region43: #{tpu_custom_call.1} parent=27 // pred_region
          %483 = vsyncadd %s465, 0
          %s484 = smul.addr %s32, 2
          %s485 = scalar_lea.hbm %s2, %s484
          %s487 = sshll.u32 %s468, 4
          %s488 = int_to_ptr.vmem [resolvable:$true] %s487
          %s489 = sshll.u32 %s485, 4
          %s490 = int_to_ptr.hbm [resolvable:$true] %s489
          %492 = dma.vmem_to_hbm [thread:$0]  %s488, 32, %s490, %s465
        $region44: #{tpu_custom_call.1} parent=27 // pred_fallthru
          _
        // Predicated region
        $region45: #{tpu_custom_call.1} parent=27 // pred_check
          %p493 = pneg %p140
        $region46: #{tpu_custom_call.1} parent=27 // pred_check_branch
          %495 = sbr.rel (%p493) target = $region48
        $region47: #{tpu_custom_call.1} parent=27 // pred_region
          %497 = vsyncadd %s470, 0
          %s498 = smul.addr %s32, 2
          %s499 = scalar_lea.hbm %s3, %s498
          %s501 = sshll.u32 %s473, 4
          %s502 = int_to_ptr.vmem [resolvable:$true] %s501
          %s503 = sshll.u32 %s499, 4
          %s504 = int_to_ptr.hbm [resolvable:$true] %s503
          %506 = dma.vmem_to_hbm [thread:$0]  %s502, 32, %s504, %s470
        $region48: #{tpu_custom_call.1} parent=27 // pred_fallthru
          _
        // Predicated region
        $region49: #{tpu_custom_call.1} parent=27 // pred_check
          %p507 = pneg %p166
        $region50: #{tpu_custom_call.1} parent=27 // pred_check_branch
          %509 = sbr.rel (%p507) target = $region52
        $region51: #{tpu_custom_call.1} parent=27 // pred_region
          %511 = vsyncadd %s475, 0
          %s512 = smul.addr %s32, 2
          %s513 = scalar_lea.hbm %s4, %s512
          %s515 = sshll.u32 %s478, 4
          %s516 = int_to_ptr.vmem [resolvable:$true] %s515
          %s517 = sshll.u32 %s513, 4
          %s518 = int_to_ptr.hbm [resolvable:$true] %s517
          %520 = dma.vmem_to_hbm [thread:$0]  %s516, 32, %s518, %s475
        $region52: #{tpu_custom_call.1} parent=27 // pred_fallthru
          _
      $region28: #{tpu_custom_call.1} parent=5 // pred_fallthru
        _
      %p521 = scmp.le.s32.totalorder 2, %s23
      // Predicated region
      $region53: #{tpu_custom_call.1} parent=5 // pred_check
        %p522 = pneg %p521
      $region54: #{tpu_custom_call.1} parent=5 // pred_check_branch
        %524 = sbr.rel (%p522) target = $region56
      $region55: #{tpu_custom_call.1} parent=5 // pred_region
        %s525 = ssub.s32 %s23, 2
        // Predicated region
        $region57: #{tpu_custom_call.1} parent=55 // pred_check
          %p526 = pneg %p120
        $region58: #{tpu_custom_call.1} parent=55 // pred_check_branch
          %528 = sbr.rel (%p526) target = $region60
        $region59: #{tpu_custom_call.1} parent=55 // pred_region
          %s529 = sand.u32 %s105, 1
          %s530 = scalar_lea.sflag [#allocation4], %s529
          %s531 = sand.u32 %s105, 1
          %s532 = smul.addr %s531, 2
          %s533 = scalar_lea.vmem [#allocation7], %s532
          %535 = dma.done %s530, 32
        $region60: #{tpu_custom_call.1} parent=55 // pred_fallthru
          _
        // Predicated region
        $region61: #{tpu_custom_call.1} parent=55 // pred_check
          %p536 = pneg %p146
        $region62: #{tpu_custom_call.1} parent=55 // pred_check_branch
          %538 = sbr.rel (%p536) target = $region64
        $region63: #{tpu_custom_call.1} parent=55 // pred_region
          %s539 = sand.u32 %s29, 1
          %s540 = scalar_lea.sflag [#allocation9], %s539
          %s541 = sand.u32 %s131, 1
          %s542 = smul.addr %s541, 2
          %s543 = scalar_lea.vmem [#allocation8], %s542
          %545 = dma.done %s540, 32
        $region64: #{tpu_custom_call.1} parent=55 // pred_fallthru
          _
        // Predicated region
        $region65: #{tpu_custom_call.1} parent=55 // pred_check
          %p546 = pneg %p172
        $region66: #{tpu_custom_call.1} parent=55 // pred_check_branch
          %548 = sbr.rel (%p546) target = $region68
        $region67: #{tpu_custom_call.1} parent=55 // pred_region
          %s549 = sand.u32 %s29, 1
          %s550 = scalar_lea.sflag [#allocation9], %s549
          %s551 = sand.u32 %s157, 1
          %s552 = smul.addr %s551, 2
          %s553 = scalar_lea.vmem [#allocation10], %s552
          %555 = dma.done %s550, 32
        $region68: #{tpu_custom_call.1} parent=55 // pred_fallthru
          _
      $region56: #{tpu_custom_call.1} parent=5 // pred_fallthru
        _
    $region6: #{tpu_custom_call.1} parent=1 // loop_footer
      %s27 = sadd.s32 1, %s23
    $region7: #{tpu_custom_call.1} parent=1 // loop_footer_branch
      %22 = sbr.rel target = $region3
    $region8: #{tpu_custom_call.1} parent=1 // loop_exit
      _
    %556 = vsyncpa [#allocation3], 1
    %s557 = scalar_lea.sflag [#allocation3], 1
    %558 = vsyncpa %s557, 1
    %559 = vsyncpa [#allocation6], 1
    %s560 = scalar_lea.sflag [#allocation6], 1
    %561 = vsyncpa %s560, 1
    %562 = vsyncpa [#allocation4], 1
    %s563 = scalar_lea.sflag [#allocation4], 1
    %564 = vsyncpa %s563, 1
    %565 = vsyncpa [#allocation9], 1
    %s566 = scalar_lea.sflag [#allocation9], 1
    %567 = vsyncpa %s566, 1

</llo_original>
